<compile_context>
chip_gen: v7x
topology: tpu7x:2x2x1
jax: 0.10.0
libtpu: 0.0.40
codegen_flags: <defaults>
</compile_context>

<pallas_src>
import functools

import jax
import jax.numpy as jnp
from jax import lax
from jax.experimental import pallas as pl
from jax.experimental.pallas import tpu as pltpu

NUM_CLASSES = 8


def _lane_tile(n):
    """Largest 128-multiple lane tile that divides n (falls back to n)."""
    for t in (2048, 1024, 512, 256, 128):
        if n >= t and n % t == 0:
            return t
    return n


def _warp_tile(n):
    """Lane tile for the warp slab; capped at 1024 to bound VMEM (2 MiB bf16 slab)."""
    for t in (1024, 512, 256, 128):
        if n >= t and n % t == 0:
            return t
    return n


# ----------------------------------------------------------------------------
# 1x1 (pointwise) convolution as VPU broadcast-FMAs (Cin/Cout are tiny, the MXU
# would be ~idle); grid tiles the lane axis, all of B folded into the block.
# ----------------------------------------------------------------------------
def _pointwise_vpu_kernel(x_ref, w_ref, b_ref, o_ref):
    x = x_ref[...]                                    # (B, Cin, T)
    wm = w_ref[...]                                   # (Cout, Cin)
    bb = b_ref[...]                                   # (Cout, 1)
    bsz, cin, t = x.shape
    cout = wm.shape[0]
    y = jnp.broadcast_to(bb.reshape(1, cout, 1), (bsz, cout, t))
    for c in range(cin):                              # static, Cin <= 6
        y = y + wm[:, c:c + 1].reshape(1, cout, 1) * x[:, c:c + 1, :]
    o_ref[...] = y


def pointwise_conv(x, w, b):
    # x: (B, Cin, HW) f32, w: (Cout, Cin), b: (Cout, 1) -> (B, Cout, HW)
    B, Cin, HW = x.shape
    Cout = w.shape[0]
    T = _lane_tile(HW)
    return pl.pallas_call(
        _pointwise_vpu_kernel,
        out_shape=jax.ShapeDtypeStruct((B, Cout, HW), jnp.float32),
        grid=(HW // T,),
        in_specs=[
            pl.BlockSpec((B, Cin, T), lambda t: (0, 0, t)),
            pl.BlockSpec((Cout, Cin), lambda t: (0, 0)),
            pl.BlockSpec((Cout, 1), lambda t: (0, 0)),
        ],
        out_specs=pl.BlockSpec((B, Cout, T), lambda t: (0, 0, t)),
        compiler_params=pltpu.CompilerParams(dimension_semantics=("parallel",)),
    )(x, w, b)


# ----------------------------------------------------------------------------
# Flow proxy: deterministic 1x1 conv over the (un-concatenated) RGB pair.
# ----------------------------------------------------------------------------
def _flow_proxy_kernel(img_ref, frm_ref, w_ref, b_ref, o_ref):
    img = img_ref[...]                                # (B, 3, T)
    frm = frm_ref[...]                                # (B, 3, T)
    wm = w_ref[...]                                   # (2, 6), already scaled by 1/rgb_max
    bb = b_ref[...]                                   # (2, 1)
    bsz, c, t = img.shape
    cout = wm.shape[0]
    y = jnp.broadcast_to(bb.reshape(1, cout, 1), (bsz, cout, t))
    for ci in range(c):
        y = y + wm[:, ci:ci + 1].reshape(1, cout, 1) * img[:, ci:ci + 1, :]
        y = y + wm[:, c + ci:c + ci + 1].reshape(1, cout, 1) * frm[:, ci:ci + 1, :]
    o_ref[...] = y


def flow_proxy(params, rgb_image, rgb_frame, rgb_max=255.0):
    # TODO(synk): FlowNet2 (pretrained checkpoint) has no Pallas equivalent; this is a
    #             deterministic 1x1-conv flow proxy.  The /rgb_max normalisation and
    #             the channel concat are folded into the weights / kernel inputs.
    B, C, H, W = rgb_image.shape
    HW = H * W
    T = _lane_tile(HW)
    w_scaled = params["w_flow"] * (1.0 / rgb_max)
    out = pl.pallas_call(
        _flow_proxy_kernel,
        out_shape=jax.ShapeDtypeStruct((B, 2, HW), jnp.float32),
        grid=(HW // T,),
        in_specs=[
            pl.BlockSpec((B, C, T), lambda t: (0, 0, t)),
            pl.BlockSpec((B, C, T), lambda t: (0, 0, t)),
            pl.BlockSpec((2, 2 * C), lambda t: (0, 0)),
            pl.BlockSpec((2, 1), lambda t: (0, 0)),
        ],
        out_specs=pl.BlockSpec((B, 2, T), lambda t: (0, 0, t)),
        compiler_params=pltpu.CompilerParams(dimension_semantics=("parallel",)),
    )(rgb_image.reshape(B, C, HW), rgb_frame.reshape(B, C, HW),
      w_scaled, params["b_flow"])
    return out.reshape(B, 2, H, W)


# ----------------------------------------------------------------------------
# Bilinear upsample (align_corners=True) as two matmuls with all channels in one
# grid step; optional fused channel argmax epilogue; optional bf16 output (the
# scale_frames consumer is a bf16 MXU warp).
# ----------------------------------------------------------------------------
def _bilinear_matrix(out_size, in_size):
    if in_size == 1:
        return jnp.ones((out_size, 1), jnp.float32)
    scale = (in_size - 1) / max(out_size - 1, 1)      # align_corners=True
    src = jnp.arange(out_size, dtype=jnp.float32) * scale
    lo = jnp.clip(jnp.floor(src).astype(jnp.int32), 0, in_size - 2)
    frac = src - lo.astype(jnp.float32)
    rows = jnp.arange(out_size)
    A = jnp.zeros((out_size, in_size), jnp.float32)
    A = A.at[rows, lo].add(1.0 - frac)
    A = A.at[rows, lo + 1].add(frac)
    return A


def _upsample_kernel(x_ref, ah_ref, awt_ref, o_ref, am_ref=None):
    x = x_ref[0]                                      # (C, h, w)
    C, h, w = x.shape
    H = ah_ref.shape[0]
    Wo = awt_ref.shape[1]
    # column upsample: contract w  -> (C, h, Wo)
    t = lax.dot_general(x, awt_ref[...], (((2,), (0,)), ((), ())),
                        preferred_element_type=jnp.float32)
    # row upsample: batched over C, contract h -> (C, H, Wo)
    ahc = jnp.broadcast_to(ah_ref[...][None], (C, H, h))
    out = lax.dot_general(ahc, t, (((2,), (1,)), ((0,), (0,))),
                          preferred_element_type=jnp.float32)
    o_ref[0] = out.astype(o_ref.dtype)
    if am_ref is not None:                            # fused channel argmax
        m = jnp.max(out, axis=0, keepdims=True)
        idx = lax.broadcasted_iota(jnp.int32, (C, H, Wo), 0)
        am_ref[0, 0] = jnp.min(jnp.where(out == m, idx, C), axis=0)


def bilinear_upsample(x, H, W, with_argmax=False, out_dtype=jnp.float32):
    # x: (B, C, h, w) -> (B, C, H, W) [, argmax (B, H, W) int32]
    B, C, h, w = x.shape
    ah = _bilinear_matrix(H, h)                       # (H, h)
    awt = _bilinear_matrix(W, w).T                    # (w, W)
    out_shape = jax.ShapeDtypeStruct((B, C, H, W), out_dtype)
    out_spec = pl.BlockSpec((1, C, H, W), lambda b: (b, 0, 0, 0))
    if with_argmax:
        out_shape = (out_shape, jax.ShapeDtypeStruct((B, 1, H, W), jnp.int32))
        out_spec = (out_spec, pl.BlockSpec((1, 1, H, W), lambda b: (b, 0, 0, 0)))
    res = pl.pallas_call(
        _upsample_kernel,
        out_shape=out_shape,
        grid=(B,),
        in_specs=[
            pl.BlockSpec((1, C, h, w), lambda b: (b, 0, 0, 0)),
            pl.BlockSpec((H, h), lambda b: (0, 0)),
            pl.BlockSpec((w, W), lambda b: (0, 0)),
        ],
        out_specs=out_spec,
        compiler_params=pltpu.CompilerParams(dimension_semantics=("parallel",)),
    )(x, ah, awt)
    if with_argmax:
        scale, am = res
        return scale, am.reshape(B, H, W)
    return res


# ----------------------------------------------------------------------------
# Fused kernel: shared bilinear flow-warp of s_frames AND scale_frames +
# occlusion mask + masked MSE (ST loss), tiled over output pixels (TP) and
# source pixels (TQ).  warp_i1 / warp_o1 stay in VMEM scratch; the output is a
# per-(b, output-tile) partial sum reduced by a tiny JAX sum in the wrapper.
# ----------------------------------------------------------------------------
def _warp_st_kernel(sfrm_ref, sclf_ref, flow_ref, simg_ref, spred_ref, part_ref,
                    wi_acc, wo_acc, *, W, TQ, TP):
    qi = pl.program_id(2)
    nq = pl.num_programs(2)

    @pl.when(qi == 0)
    def _():
        wi_acc[...] = jnp.zeros_like(wi_acc)
        wo_acc[...] = jnp.zeros_like(wo_acc)

    # output-pixel (p) coordinates + flow displacement for this output tile
    p0 = pl.program_id(1) * TP
    p_lin = lax.broadcasted_iota(jnp.int32, (1, TP), 1) + p0
    fx = flow_ref[0, 0:1, :]                          # horizontal displacement
    fy = flow_ref[0, 1:2, :]                          # vertical displacement
    x_s = (p_lin % W).astype(jnp.float32) + fx        # (1, TP) sample coords
    y_s = (p_lin // W).astype(jnp.float32) + fy

    # source-pixel (q) coordinates: div/mod on a (TQ, 1) iota only, broadcast
    # against the (1, TP) sample coords when forming the tent weights.
    q0 = qi * TQ
    q_idx = lax.broadcasted_iota(jnp.int32, (TQ, 1), 0) + q0
    y_q = (q_idx // W).astype(jnp.float32)            # (TQ, 1)
    x_q = (q_idx % W).astype(jnp.float32)             # (TQ, 1)
    wy = jnp.maximum(0.0, 1.0 - jnp.abs(y_s - y_q))   # (TQ, TP)
    wx = jnp.maximum(0.0, 1.0 - jnp.abs(x_s - x_q))   # (TQ, TP)
    kb = (wy * wx).astype(jnp.bfloat16)               # shared (TQ, TP) warp slab

    wi_acc[...] += jnp.dot(sfrm_ref[0], kb, preferred_element_type=jnp.float32)
    wo_acc[...] += jnp.dot(sclf_ref[0], kb, preferred_element_type=jnp.float32)

    @pl.when(qi == nq - 1)
    def _():
        # noc_mask2 = exp(-|sum_c(s_image - warp_i1)|)   (matches the reference)
        diff = simg_ref[0] - wi_acc[...]              # (Cimg, TP)
        mask = jnp.exp(-jnp.abs(jnp.sum(diff, axis=0, keepdims=True)))
        d = (spred_ref[0] - wo_acc[...]) * mask       # (Ncls, TP)
        s = jnp.sum(d * d, keepdims=True)             # (1, 1)
        part_ref[0, 0] = jnp.zeros((8, 128), jnp.float32) + s


def warp_st_loss(s_frames, scale_frames, flow, s_image, scale_pred):
    # TODO(synk): the bilinear tent warp zeroes out-of-bounds samples instead of the
    #             exact CUDA Resample2d boundary behaviour.
    B, Cimg, H, W = s_frames.shape
    Ncls = scale_pred.shape[1]
    HW = H * W
    TP = _warp_tile(HW)
    TQ = _warp_tile(HW)
    T = HW // TP
    NQ = HW // TQ
    partials = pl.pallas_call(
        functools.partial(_warp_st_kernel, W=W, TQ=TQ, TP=TP),
        out_shape=jax.ShapeDtypeStruct((B, T, 8, 128), jnp.float32),
        grid=(B, T, NQ),
        in_specs=[
            pl.BlockSpec((1, Cimg, TQ), lambda b, t, q: (b, 0, q)),
            pl.BlockSpec((1, Ncls, TQ), lambda b, t, q: (b, 0, q)),
            pl.BlockSpec((1, 2, TP), lambda b, t, q: (b, 0, t)),
            pl.BlockSpec((1, Cimg, TP), lambda b, t, q: (b, 0, t)),
            pl.BlockSpec((1, Ncls, TP), lambda b, t, q: (b, 0, t)),
        ],
        out_specs=pl.BlockSpec((1, 1, 8, 128), lambda b, t, q: (b, t, 0, 0)),
        scratch_shapes=[pltpu.VMEM((Cimg, TP), jnp.float32),
                        pltpu.VMEM((Ncls, TP), jnp.float32)],
        compiler_params=pltpu.CompilerParams(
            dimension_semantics=("parallel", "parallel", "arbitrary"),
            vmem_limit_bytes=32 * 1024 * 1024),
    )(s_frames.reshape(B, Cimg, HW).astype(jnp.bfloat16),   # bf16 MXU operand
      scale_frames.reshape(B, Ncls, HW).astype(jnp.bfloat16),
      flow.reshape(B, 2, HW), s_image.reshape(B, Cimg, HW),
      scale_pred.reshape(B, Ncls, HW))
    return 0.1 * jnp.sum(partials[:, :, 0, 0]) / float(B * Ncls * HW)


# ----------------------------------------------------------------------------
# Pixel-wise cross entropy (mean over B*h*w), per-batch partial sums.
# ----------------------------------------------------------------------------
def _ce_kernel(logits_ref, label_ref, part_ref):
    logits = logits_ref[0]                            # (Ncls, hw)
    label = label_ref[0]                              # (1, hw) int32
    ncls, hw = logits.shape
    m = jnp.max(logits, axis=0, keepdims=True)
    lse = m + jnp.log(jnp.sum(jnp.exp(logits - m), axis=0, keepdims=True))
    cls_idx = lax.broadcasted_iota(jnp.int32, (ncls, hw), 0)
    onehot = (cls_idx == label).astype(jnp.float32)
    picked = jnp.sum(logits * onehot, axis=0, keepdims=True)
    s = jnp.sum(lse - picked, keepdims=True)          # (1, 1)
    part_ref[0] = jnp.zeros((8, 128), jnp.float32) + s


def ce_loss(preds, label):
    # TODO(synk): no ignore_index handling (assumes every label is a valid class id).
    B, Ncls, h, w = preds.shape
    hw = h * w
    partials = pl.pallas_call(
        _ce_kernel,
        out_shape=jax.ShapeDtypeStruct((B, 8, 128), jnp.float32),
        grid=(B,),
        in_specs=[pl.BlockSpec((1, Ncls, hw), lambda b: (b, 0, 0)),
                  pl.BlockSpec((1, 1, hw), lambda b: (b, 0, 0))],
        out_specs=pl.BlockSpec((1, 8, 128), lambda b: (b, 0, 0)),
        compiler_params=pltpu.CompilerParams(dimension_semantics=("parallel",)),
    )(preds.reshape(B, Ncls, hw), label.reshape(B, 1, hw).astype(jnp.int32))
    return jnp.sum(partials[:, 0, 0]) / float(B * hw)


# ----------------------------------------------------------------------------
# Model pieces (deterministic synthetic parameters)
# ----------------------------------------------------------------------------
def init_params(key):
    k1, k2, k3 = jax.random.split(key, 3)
    return {
        "w_student": 0.1 * jax.random.normal(k1, (NUM_CLASSES, 3), jnp.float32),
        "b_student": 0.01 * jax.random.normal(k2, (NUM_CLASSES, 1), jnp.float32),
        "w_flow": 0.05 * jax.random.normal(k3, (2, 6), jnp.float32),
        "b_flow": jnp.zeros((2, 1), jnp.float32),
    }


def student_forward(params, x):
    # "student" = stride-2 downsample + 1x1 conv.
    # TODO(synk): the stride-2 slice stays in the XLA wrapper; a lane-strided in-kernel
    #             DMA would fold it into the conv read.
    xd = x[:, :, ::2, ::2]
    B, C, h, w = xd.shape
    y = pointwise_conv(xd.reshape(B, C, h * w), params["w_student"], params["b_student"])
    return y.reshape(B, NUM_CLASSES, h, w)


def flow_model_forward(params, rgb_frame, s_frames, rgb_image, s_image, label, mode):
    B, C, H, W = s_image.shape
    if mode == "test":
        preds = student_forward(params, s_image)
        return bilinear_upsample(preds, H, W)
    # mode == "train"  (cal_loss)
    preds = student_forward(params, s_image)
    preds_frame = student_forward(params, s_frames)
    scale_pred, output = bilinear_upsample(preds, H, W, with_argmax=True)
    scale_frames = bilinear_upsample(preds_frame, H, W, out_dtype=jnp.bfloat16)
    flow_i21 = flow_proxy(params, rgb_image, rgb_frame)
    st = warp_st_loss(s_frames, scale_frames, flow_i21, s_image, scale_pred)
    ce = ce_loss(preds, label)
    return {"output": output, "ce_loss": ce, "st_loss": st, "total_loss": st + ce}


# ----------------------------------------------------------------------------
if __name__ == "__main__":
    key = jax.random.PRNGKey(0)
    k = jax.random.split(key, 6)
    B, C, H, W = 2, 3, 16, 16

    params = init_params(k[0])
    rgb_frame = jax.random.uniform(k[1], (B, C, H, W), jnp.float32) * 255.0
    rgb_image = jax.random.uniform(k[2], (B, C, H, W), jnp.float32) * 255.0
    s_frames = jax.random.normal(k[3], (B, C, H, W), jnp.float32)
    s_image = jax.random.normal(k[4], (B, C, H, W), jnp.float32)
    label = jax.random.randint(k[5], (B, H // 2, W // 2), 0, NUM_CLASSES, jnp.int32)

    train_out = flow_model_forward(params, rgb_frame, s_frames, rgb_image, s_image, label, "train")
    test_out = flow_model_forward(params, rgb_frame, s_frames, rgb_image, s_image, label, "test")

    jax.block_until_ready(train_out)
    jax.block_until_ready(test_out)

    assert test_out.shape == (B, NUM_CLASSES, H, W)
    assert train_out["output"].shape == (B, H, W)
    assert train_out["total_loss"].shape == ()
    print("KERNEL_OK")
</pallas_src>

<mosaic_0001>
module attributes {stable_mosaic.version = 11 : i64} {
  func.func @_pointwise_vpu_kernel(%arg0: i32, %arg1: memref<2x3x64xf32, #tpu.memory_space<vmem>>, %arg2: memref<8x3xf32, #tpu.memory_space<vmem>>, %arg3: memref<8x1xf32, #tpu.memory_space<vmem>>, %arg4: memref<2x8x64xf32, #tpu.memory_space<vmem>>) attributes {dimension_semantics = [#tpu.dimension_semantics<parallel>], iteration_bounds = array<i64: 1>, scalar_prefetch = 0 : i64, scratch_operands = 0 : i64, tpu.core_type = #tpu.core_type<tc>, window_params = [{transform_indices = @transform_0, window_bounds = array<i64: 2, 3, 64>}, {pipeline_mode = #tpu.pipeline_mode<synchronous>, transform_indices = @transform_1, window_bounds = array<i64: 8, 3>}, {pipeline_mode = #tpu.pipeline_mode<synchronous>, transform_indices = @transform_2, window_bounds = array<i64: 8, 1>}, {transform_indices = @transform_3, window_bounds = array<i64: 2, 8, 64>}]} {
    %c0 = arith.constant 0 : index
    %c0_0 = arith.constant 0 : index
    %c0_1 = arith.constant 0 : index
    %0 = vector.load %arg1[%c0, %c0_0, %c0_1] : memref<2x3x64xf32, #tpu.memory_space<vmem>>, vector<2x3x64xf32>
    %c0_2 = arith.constant 0 : index
    %c0_3 = arith.constant 0 : index
    %1 = vector.load %arg2[%c0_2, %c0_3] : memref<8x3xf32, #tpu.memory_space<vmem>>, vector<8x3xf32>
    %c0_4 = arith.constant 0 : index
    %c0_5 = arith.constant 0 : index
    %2 = vector.load %arg3[%c0_4, %c0_5] : memref<8x1xf32, #tpu.memory_space<vmem>>, vector<8x1xf32>
    %3 = vector.shape_cast %2 : vector<8x1xf32> to vector<1x8x1xf32>
    %4 = vector.shape_cast %3 : vector<1x8x1xf32> to vector<1x8x1xf32>
    %5 = vector.broadcast %4 : vector<1x8x1xf32> to vector<2x8x64xf32>
    %6 = vector.extract_strided_slice %1 {offsets = [0, 0], sizes = [8, 1], strides = [1, 1]} : vector<8x3xf32> to vector<8x1xf32>
    %7 = vector.shape_cast %6 : vector<8x1xf32> to vector<1x8x1xf32>
    %8 = vector.extract_strided_slice %0 {offsets = [0, 0, 0], sizes = [2, 1, 64], strides = [1, 1, 1]} : vector<2x3x64xf32> to vector<2x1x64xf32>
    %9 = vector.broadcast %7 : vector<1x8x1xf32> to vector<2x8x64xf32>
    %10 = vector.broadcast %8 : vector<2x1x64xf32> to vector<2x8x64xf32>
    %11 = arith.mulf %9, %10 : vector<2x8x64xf32>
    %12 = arith.addf %5, %11 : vector<2x8x64xf32>
    %13 = vector.extract_strided_slice %1 {offsets = [0, 1], sizes = [8, 1], strides = [1, 1]} : vector<8x3xf32> to vector<8x1xf32>
    %14 = vector.shape_cast %13 : vector<8x1xf32> to vector<1x8x1xf32>
    %15 = vector.extract_strided_slice %0 {offsets = [0, 1, 0], sizes = [2, 1, 64], strides = [1, 1, 1]} : vector<2x3x64xf32> to vector<2x1x64xf32>
    %16 = vector.broadcast %14 : vector<1x8x1xf32> to vector<2x8x64xf32>
    %17 = vector.broadcast %15 : vector<2x1x64xf32> to vector<2x8x64xf32>
    %18 = arith.mulf %16, %17 : vector<2x8x64xf32>
    %19 = arith.addf %12, %18 : vector<2x8x64xf32>
    %20 = vector.extract_strided_slice %1 {offsets = [0, 2], sizes = [8, 1], strides = [1, 1]} : vector<8x3xf32> to vector<8x1xf32>
    %21 = vector.shape_cast %20 : vector<8x1xf32> to vector<1x8x1xf32>
    %22 = vector.extract_strided_slice %0 {offsets = [0, 2, 0], sizes = [2, 1, 64], strides = [1, 1, 1]} : vector<2x3x64xf32> to vector<2x1x64xf32>
    %23 = vector.broadcast %21 : vector<1x8x1xf32> to vector<2x8x64xf32>
    %24 = vector.broadcast %22 : vector<2x1x64xf32> to vector<2x8x64xf32>
    %25 = arith.mulf %23, %24 : vector<2x8x64xf32>
    %26 = arith.addf %19, %25 : vector<2x8x64xf32>
    %c0_6 = arith.constant 0 : index
    %c0_7 = arith.constant 0 : index
    %c0_8 = arith.constant 0 : index
    %27 = vector.load %arg4[%c0_6, %c0_7, %c0_8] : memref<2x8x64xf32, #tpu.memory_space<vmem>>, vector<2x8x64xf32>
    tpu.vector_store %arg4[%c0_6, %c0_7, %c0_8], %26 {strides = array<i32>} : memref<2x8x64xf32, #tpu.memory_space<vmem>>, vector<2x8x64xf32>,
    return
  }
  func.func @transform_0(%arg0: i32) -> (i32, i32, i32) {
    %c0_i32 = arith.constant 0 : i32
    %c0_i32_0 = arith.constant 0 : i32
    %c0_i32_1 = arith.constant 0 : i32
    return %c0_i32, %c0_i32_0, %arg0 : i32, i32, i32
  }
  func.func @transform_1(%arg0: i32) -> (i32, i32) {
    %c0_i32 = arith.constant 0 : i32
    %c0_i32_0 = arith.constant 0 : i32
    %c0_i32_1 = arith.constant 0 : i32
    return %c0_i32, %c0_i32_0 : i32, i32
  }
  func.func @transform_2(%arg0: i32) -> (i32, i32) {
    %c0_i32 = arith.constant 0 : i32
    %c0_i32_0 = arith.constant 0 : i32
    %c0_i32_1 = arith.constant 0 : i32
    return %c0_i32, %c0_i32_0 : i32, i32
  }
  func.func @transform_3(%arg0: i32) -> (i32, i32, i32) {
    %c0_i32 = arith.constant 0 : i32
    %c0_i32_0 = arith.constant 0 : i32
    %c0_i32_1 = arith.constant 0 : i32
    return %c0_i32, %c0_i32_0, %arg0 : i32, i32, i32
  }
}

</mosaic_0001>

<llo_original>
// kernel: tpu_custom_call.1
$region0: #{tpu_custom_call.1}
  #allocation0 [shape = 'u32[]', space=smem, size = 0x4, offset = 0x4, fixed_abs, tag = 'smem constant byte address 0x4 - core index']
  #allocation1 [shape = 'u32[144,128]{1,0:T(1,128)}', space=vmem, size = 0x12000, scoped, tag = 'internal scratch']
  %s0 = inlined_call_operand.vmem [shape: f32[2,3,64], index: 0, kind: input, shape index: {}]
  %s1 = inlined_call_operand.vmem [shape: f32[8,3], index: 1, kind: input, shape index: {}]
  %s2 = inlined_call_operand.vmem [shape: f32[8,1], index: 2, kind: input, shape index: {}]
  %s3 = inlined_call_operand.hbm [shape: f32[2,8,64], index: 3, kind: output, shape index: {}]
  %s4 = sld [smem:[#allocation0]]
  $region22: #{tpu_custom_call.1} parent=0
    _
  %s6 = ssub.s32 1, %s4
  %s7 = scalar_select 0, %s6, %s4
  $region1: #{tpu_custom_call.1} parent=0
    #allocation2 [shape = 'u8[8192]{0}', space=vmem, size = 0x2000, scoped, tag = 'output window, operand 0, single buffered']
    #allocation3 [shape = 's32[1]{0}', space=sflag, size = 0x4, scoped, tag = 'scoped memory for tpu_custom_call.1']
    %8 = vsyncpa [#allocation3], 0
    // Predicated region
    $region2: #{tpu_custom_call.1} parent=1 // pred_check
      _
    $region3: #{tpu_custom_call.1} parent=1 // pred_check_branch
      %10 = sbr.rel (0) target = $region5
    $region4: #{tpu_custom_call.1} parent=1 // pred_region
      _
    $region5: #{tpu_custom_call.1} parent=1 // pred_fallthru
      _
    // Predicated region
    $region6: #{tpu_custom_call.1} parent=1 // pred_check
      _
    $region7: #{tpu_custom_call.1} parent=1 // pred_check_branch
      %12 = sbr.rel (0) target = $region9
    $region8: #{tpu_custom_call.1} parent=1 // pred_region
      _
    $region9: #{tpu_custom_call.1} parent=1 // pred_fallthru
      _
    // Predicated region
    $region10: #{tpu_custom_call.1} parent=1 // pred_check
      _
    $region11: #{tpu_custom_call.1} parent=1 // pred_check_branch
      %14 = sbr.rel (0) target = $region13
    $region12: #{tpu_custom_call.1} parent=1 // pred_region
      _
    $region13: #{tpu_custom_call.1} parent=1 // pred_fallthru
      _
    %v15 = vld [vmem:[%s0] sm:$0x7]
    %v16 = vld [vmem:[%s0 + $0x4] sm:$0x7]
    %v17 = vld [vmem:[%s1] sm:$0xff]
    %v18 = vld [vmem:[%s2] sm:$0xff]
    %20 = vset.pattern.permute.xlu0 0
    %21 = vperm.xlu0 %20, %v18
    %v22 = vpop.permute.xlu0 %21
    %25 = vset.pattern.permute.xlu0 0
    %26 = vperm.xlu0 %25, %v17
    %v27 = vpop.permute.xlu0 %26
    %v29 = vlaneseq
    %v30 = vshrl.u32 %v29, 7
    %v31 = vsub.s32 0, %v30
    %v32 = vrot.slane %v15, %v31
    %v33 = vlaneseq
    %v34 = vshrl.u32 %v33, 7
    %v35 = vsub.s32 0, %v34
    %v36 = vrot.slane %v16, %v35
    %v37 = vmul.f32 %v27, %v32
    %v38 = vmul.f32 %v27, %v36
    %v39 = vadd.f32 %v22, %v37
    %v40 = vadd.f32 %v22, %v38
    %41 = vset.pattern.permute.xlu0 1
    %42 = vperm.xlu0 %41, %v17
    %v43 = vpop.permute.xlu0 %42
    %v45 = vlaneseq
    %v46 = vshrl.u32 %v45, 7
    %v47 = vsub.s32 1, %v46
    %v48 = vrot.slane %v15, %v47
    %v49 = vlaneseq
    %v50 = vshrl.u32 %v49, 7
    %v51 = vsub.s32 1, %v50
    %v52 = vrot.slane %v16, %v51
    %v53 = vmul.f32 %v43, %v48
    %v54 = vmul.f32 %v43, %v52
    %v55 = vadd.f32 %v39, %v53
    %v56 = vadd.f32 %v40, %v54
    %57 = vset.pattern.permute.xlu0 2
    %58 = vperm.xlu0 %57, %v17
    %v59 = vpop.permute.xlu0 %58
    %v61 = vlaneseq
    %v62 = vshrl.u32 %v61, 7
    %v63 = vsub.s32 2, %v62
    %v64 = vrot.slane %v15, %v63
    %v65 = vlaneseq
    %v66 = vshrl.u32 %v65, 7
    %v67 = vsub.s32 2, %v66
    %v68 = vrot.slane %v16, %v67
    %v69 = vmul.f32 %v59, %v64
    %v70 = vmul.f32 %v59, %v68
    %v71 = vadd.f32 %v55, %v69
    %v72 = vadd.f32 %v56, %v70
    %vm73 = vcmask 523264
    %74 = vst.msk [vmem:[#allocation2] sm:$0xff] %vm73, %v71
    %75 = vst.msk [vmem:[#allocation2 + $0x8] sm:$0xff] %vm73, %v72
    // Predicated region
    $region14: #{tpu_custom_call.1} parent=1 // pred_check
      _
    $region15: #{tpu_custom_call.1} parent=1 // pred_check_branch
      %77 = sbr.rel (0) target = $region17
    $region16: #{tpu_custom_call.1} parent=1 // pred_region
      %s79 = ssub.s32 256, 256
      %80 = vsyncadd [#allocation3], %s79
      %s81 = sshll.u32 [#allocation2], 4
      %s82 = int_to_ptr.vmem [resolvable:$true] %s81
      %87 = dma.vmem_to_hbm [thread:$0]  %s82, 256, %s3, [#allocation3], 128, 128, 8
    $region17: #{tpu_custom_call.1} parent=1 // pred_fallthru
      _
    // Predicated region
    $region18: #{tpu_custom_call.1} parent=1 // pred_check
      _
    $region19: #{tpu_custom_call.1} parent=1 // pred_check_branch
      %89 = sbr.rel (0) target = $region21
    $region20: #{tpu_custom_call.1} parent=1 // pred_region
      %90 = dma.done [#allocation3], 256
    $region21: #{tpu_custom_call.1} parent=1 // pred_fallthru
      _
    %91 = vsyncpa [#allocation3], 1

</llo_original>
